<compile_context>
chip_gen: v7x
topology: tpu7x:2x2x1
jax: 0.10.0
libtpu: 0.0.40
codegen_flags: <defaults>
</compile_context>

<pallas_src>
import jax
import jax.numpy as jnp
import numpy as np
from jax.experimental import pallas as pl
from jax.experimental.pallas import tpu as pltpu


def _round_up(x, m):
    return (x + m - 1) // m * m


def _cdiv(a, b):
    return (a + b - 1) // b


def _vmem_budget_bytes():
    # Generation-aware VMEM budget: ~half of physical VMEM.
    # v5e/v6e: 128 MiB -> 64 MiB budget;  v7x: 64 MiB -> 32 MiB budget.
    try:
        cap = pltpu.get_tpu_info().vmem_capacity_bytes
    except Exception:
        cap = 64 * 1024 * 1024          # conservative fallback (v7x-sized)
    return max(16 * 1024 * 1024, cap // 2)


def _disc_block_kernel_single_k(p_ref, w_ref, shift_ref, o_ref):
    # p_ref:     (TM, K_pad)  bf16 im2col patch tile
    # w_ref:     (K_pad, Cp)  bf16 folded conv weight (BN scale folded in)
    # shift_ref: (1,  Cp)     f32 folded bias/BN shift
    # o_ref:     (TM, Cp)     output tile
    y = jnp.dot(p_ref[...], w_ref[...], preferred_element_type=jnp.float32)
    y = y + shift_ref[...]
    o_ref[...] = jnp.where(y > 0, y, 0.2 * y).astype(o_ref.dtype)  # LeakyReLU(0.2)


def _disc_block_kernel_multi_k(p_ref, w_ref, shift_ref, o_ref):
    # Fallback for very large Cin: accumulate directly into the VMEM-resident
    # f32 output tile (no separate accumulator scratch).
    k = pl.program_id(1)

    @pl.when(k == 0)
    def _():
        o_ref[...] = jnp.zeros_like(o_ref)

    o_ref[...] += jnp.dot(p_ref[...], w_ref[...],
                          preferred_element_type=jnp.float32)

    @pl.when(k == pl.num_programs(1) - 1)
    def _():
        y = o_ref[...] + shift_ref[...]
        o_ref[...] = jnp.where(y > 0, y, 0.2 * y)


def discriminator_block(x, weight, bias, gamma, beta, running_mean, running_var,
                        eps=1e-5, compute_dtype=jnp.bfloat16,
                        out_dtype=jnp.float32):
    """Eval-mode DiscriminatorBlock forward.

    x: (N, Cin, H, W).  weight: (Cout, Cin, 3, 3).
    Returns (N, Cout, H//2, W//2) in out_dtype.
    Use compute_dtype=jnp.float32 if tighter accuracy than bf16 is needed.
    """
    N, Cin, H, W = x.shape
    Cout = weight.shape[0]
    Hout = (H + 2 - 3) // 2 + 1
    Wout = (W + 2 - 3) // 2 + 1
    M = N * Hout * Wout
    K = Cin * 9

    # ---- fold conv bias + eval-mode BN into weight / shift (f32, tiny) -----
    scale = gamma / jnp.sqrt(running_var + eps)               # (Cout,)
    shift = (bias - running_mean) * scale + beta              # (Cout,)
    w_mat = weight.reshape(Cout, K).T * scale[None, :]        # (K, Cout) f32

    # ---- im2col patch extraction, built directly in compute_dtype ----------
    xc = x.astype(compute_dtype)
    x_pad = jnp.pad(xc, ((0, 0), (0, 0), (1, 1), (1, 1)))
    cols = []
    for kh in range(3):
        for kw in range(3):
            cols.append(x_pad[:, :, kh:kh + 2 * Hout:2, kw:kw + 2 * Wout:2])
    patches = jnp.stack(cols, axis=-1)                        # (N,Cin,Ho,Wo,9)
    patches = patches.transpose(0, 2, 3, 1, 4).reshape(M, K)  # (M, K) bf16

    # ---- tiling -------------------------------------------------------------
    C_pad = _round_up(Cout, 128)          # lane-dense output stores
    K128 = _round_up(K, 128)              # lane dim of the patch tile

    K_SINGLE_MAX = 4608                   # DCGAN K = Cin*9 always fits
    single_k = K128 <= K_SINGLE_MAX
    if single_k:
        K_pad = TK = K128
        n_k = 1
    else:
        # Balanced K split (~512-wide tiles), padding K only to n_k * TK.
        n_k = _cdiv(K128, 512)
        TK = _round_up(_cdiv(K128, n_k), 128)
        K_pad = TK * n_k

    out_kdtype = out_dtype if single_k else jnp.float32   # multi-K accumulates in o_ref
    in_bytes = jnp.dtype(compute_dtype).itemsize
    ob = jnp.dtype(out_kdtype).itemsize

    # TM: as large as the VMEM budget allows (cap 4096), balanced across tiles,
    # and >= 2 tiles so both TensorCores get work on multi-TC parts (v7x).
    budget = _vmem_budget_bytes()
    fixed = 2 * TK * C_pad * in_bytes + 2 * 8 * C_pad * 4     # weight + shift (dbl-buf)
    per_row = 2 * TK * in_bytes + 2 * C_pad * ob              # patch + out (dbl-buf)
    tm_limit = max(8, (budget - fixed) // per_row)
    tm_limit = max(8, min(4096, tm_limit // 8 * 8))
    n_m = max(1, _cdiv(M, tm_limit))
    if n_m == 1 and M >= 16:
        n_m = 2
    TM = _round_up(_cdiv(M, n_m), 8)
    M_pad = TM * n_m

    # ---- pad operands (already in compute_dtype) ----------------------------
    patches_p = jnp.zeros((M_pad, K_pad), compute_dtype).at[:M, :K].set(patches)
    w_p = jnp.zeros((K_pad, C_pad), compute_dtype).at[:K, :Cout].set(
        w_mat.astype(compute_dtype))
    shift_p = jnp.zeros((1, C_pad), jnp.float32).at[0, :Cout].set(shift)

    if single_k:
        grid = (n_m,)
        in_specs = [
            pl.BlockSpec((TM, K_pad), lambda i: (i, 0)),
            pl.BlockSpec((K_pad, C_pad), lambda i: (0, 0)),   # constant block: DMA'd once
            pl.BlockSpec((1, C_pad), lambda i: (0, 0)),
        ]
        out_specs = pl.BlockSpec((TM, C_pad), lambda i: (i, 0))
        kernel = _disc_block_kernel_single_k
        dims = ("parallel",)
    else:
        grid = (n_m, n_k)
        in_specs = [
            pl.BlockSpec((TM, TK), lambda i, k: (i, k)),
            pl.BlockSpec((TK, C_pad), lambda i, k: (k, 0)),
            pl.BlockSpec((1, C_pad), lambda i, k: (0, 0)),
        ]
        out_specs = pl.BlockSpec((TM, C_pad), lambda i, k: (i, 0))
        kernel = _disc_block_kernel_multi_k
        dims = ("parallel", "arbitrary")

    out_flat = pl.pallas_call(
        kernel,
        out_shape=jax.ShapeDtypeStruct((M_pad, C_pad), out_kdtype),
        grid_spec=pltpu.PrefetchScalarGridSpec(
            num_scalar_prefetch=0,
            grid=grid,
            in_specs=in_specs,
            out_specs=out_specs,
        ),
        compiler_params=pltpu.CompilerParams(
            dimension_semantics=dims,
            vmem_limit_bytes=int(budget),
        ),
    )(patches_p, w_p, shift_p)

    out = out_flat[:M, :Cout].astype(out_dtype)
    out = out.reshape(N, Hout, Wout, Cout).transpose(0, 3, 1, 2)
    return out


def _reference(x, weight, bias, gamma, beta, running_mean, running_var, eps=1e-5):
    y = jax.lax.conv_general_dilated(
        x, weight, window_strides=(2, 2), padding=((1, 1), (1, 1)),
        dimension_numbers=('NCHW', 'OIHW', 'NCHW'))
    y = y + bias.reshape(1, -1, 1, 1)
    scale = (gamma / jnp.sqrt(running_var + eps)).reshape(1, -1, 1, 1)
    shift = (beta - running_mean * gamma / jnp.sqrt(running_var + eps)).reshape(
        1, -1, 1, 1)
    y = y * scale + shift
    return jnp.where(y > 0, y, 0.2 * y)


if __name__ == "__main__":
    key = jax.random.PRNGKey(0)
    kx, kw, kb, kg, kbe = jax.random.split(key, 5)

    N, Cin, H, W = 2, 4, 16, 16
    Cout = 8

    x = jax.random.normal(kx, (N, Cin, H, W), dtype=jnp.float32)
    weight = jax.random.normal(kw, (Cout, Cin, 3, 3), dtype=jnp.float32) * 0.1
    bias = jax.random.normal(kb, (Cout,), dtype=jnp.float32) * 0.1
    gamma = 1.0 + 0.1 * jax.random.normal(kg, (Cout,), dtype=jnp.float32)
    beta = 0.1 * jax.random.normal(kbe, (Cout,), dtype=jnp.float32)
    running_mean = jnp.zeros((Cout,), dtype=jnp.float32)   # PyTorch BN init
    running_var = jnp.ones((Cout,), dtype=jnp.float32)     # PyTorch BN init

    out = discriminator_block(x, weight, bias, gamma, beta,
                              running_mean, running_var)
    out = jax.block_until_ready(out)

    ref = _reference(x, weight, bias, gamma, beta, running_mean, running_var)
    # bf16 operands (f32 accumulation) -> relaxed tolerance vs f32 reference.
    np.testing.assert_allclose(np.asarray(out), np.asarray(ref),
                               rtol=2e-2, atol=2e-2)
    assert out.shape == (N, Cout, H // 2, W // 2)
    print("KERNEL_OK")
</pallas_src>

<mosaic_0001>
module attributes {stable_mosaic.version = 11 : i64} {
  func.func @_disc_block_kernel_single_k(%arg0: i32, %arg1: memref<64x128xbf16, #tpu.memory_space<vmem>>, %arg2: memref<128x128xbf16, #tpu.memory_space<vmem>>, %arg3: memref<1x128xf32, #tpu.memory_space<vmem>>, %arg4: memref<64x128xf32, #tpu.memory_space<vmem>>) attributes {dimension_semantics = [#tpu.dimension_semantics<parallel>], iteration_bounds = array<i64: 2>, scalar_prefetch = 0 : i64, scratch_operands = 0 : i64, tpu.core_type = #tpu.core_type<tc>, window_params = [{transform_indices = @transform_0, window_bounds = array<i64: 64, 128>}, {pipeline_mode = #tpu.pipeline_mode<synchronous>, transform_indices = @transform_1, window_bounds = array<i64: 128, 128>}, {pipeline_mode = #tpu.pipeline_mode<synchronous>, transform_indices = @transform_2, window_bounds = array<i64: 1, 128>}, {transform_indices = @transform_3, window_bounds = array<i64: 64, 128>}]} {
    %c0 = arith.constant 0 : index
    %c0_0 = arith.constant 0 : index
    %0 = vector.load %arg1[%c0, %c0_0] : memref<64x128xbf16, #tpu.memory_space<vmem>>, vector<64x128xbf16>
    %c0_1 = arith.constant 0 : index
    %c0_2 = arith.constant 0 : index
    %1 = vector.load %arg2[%c0_1, %c0_2] : memref<128x128xbf16, #tpu.memory_space<vmem>>, vector<128x128xbf16>
    %cst = arith.constant dense<0.000000e+00> : vector<64x128xf32>
    %2 = tpu.matmul %0, %1, %cst {dimension_numbers = #tpu.dot_dimension_numbers<[1], [0], [0], [1], [0, 0, 1, 1], [], []>} : vector<64x128xbf16>, vector<128x128xbf16>, vector<64x128xf32> -> vector<64x128xf32>
    %c0_3 = arith.constant 0 : index
    %c0_4 = arith.constant 0 : index
    %3 = vector.load %arg3[%c0_3, %c0_4] : memref<1x128xf32, #tpu.memory_space<vmem>>, vector<1x128xf32>
    %4 = vector.broadcast %3 : vector<1x128xf32> to vector<64x128xf32>
    %5 = arith.addf %2, %4 : vector<64x128xf32>
    %cst_5 = arith.constant 0.000000e+00 : f32
    %6 = vector.broadcast %cst_5 : f32 to vector<64x128xf32>
    %7 = arith.cmpf ogt, %5, %6 : vector<64x128xf32>
    %cst_6 = arith.constant 2.000000e-01 : f32
    %8 = vector.broadcast %cst_6 : f32 to vector<64x128xf32>
    %9 = arith.mulf %8, %5 : vector<64x128xf32>
    %10 = arith.select %7, %5, %9 : vector<64x128xi1>, vector<64x128xf32>
    %c0_7 = arith.constant 0 : index
    %c0_8 = arith.constant 0 : index
    %11 = vector.load %arg4[%c0_7, %c0_8] : memref<64x128xf32, #tpu.memory_space<vmem>>, vector<64x128xf32>
    tpu.vector_store %arg4[%c0_7, %c0_8], %10 {strides = array<i32>} : memref<64x128xf32, #tpu.memory_space<vmem>>, vector<64x128xf32>,
    return
  }
  func.func @transform_0(%arg0: i32) -> (i32, i32) {
    %c0_i32 = arith.constant 0 : i32
    %c0_i32_0 = arith.constant 0 : i32
    return %arg0, %c0_i32 : i32, i32
  }
  func.func @transform_1(%arg0: i32) -> (i32, i32) {
    %c0_i32 = arith.constant 0 : i32
    %c0_i32_0 = arith.constant 0 : i32
    %c0_i32_1 = arith.constant 0 : i32
    return %c0_i32, %c0_i32_0 : i32, i32
  }
  func.func @transform_2(%arg0: i32) -> (i32, i32) {
    %c0_i32 = arith.constant 0 : i32
    %c0_i32_0 = arith.constant 0 : i32
    %c0_i32_1 = arith.constant 0 : i32
    return %c0_i32, %c0_i32_0 : i32, i32
  }
  func.func @transform_3(%arg0: i32) -> (i32, i32) {
    %c0_i32 = arith.constant 0 : i32
    %c0_i32_0 = arith.constant 0 : i32
    return %arg0, %c0_i32 : i32, i32
  }
}

</mosaic_0001>

<llo_original>
// kernel: tpu_custom_call.1
$region0: #{tpu_custom_call.1}
  #allocation0 [shape = 'u32[]', space=smem, size = 0x4, offset = 0x4, fixed_abs, tag = 'smem constant byte address 0x4 - core index']
  #allocation1 [shape = 'u32[144,128]{1,0:T(1,128)}', space=vmem, size = 0x12000, scoped, tag = 'internal scratch']
  %s0 = inlined_call_operand.hbm [shape: bf16[128,128], index: 0, kind: input, shape index: {}]
  %s1 = inlined_call_operand.hbm [shape: bf16[128,128], index: 1, kind: input, shape index: {}]
  %s2 = inlined_call_operand.vmem [shape: f32[1,128], index: 2, kind: input, shape index: {}]
  %s3 = inlined_call_operand.hbm [shape: f32[128,128], index: 3, kind: output, shape index: {}]
  %s4 = sld [smem:[#allocation0]]
  $region53: #{tpu_custom_call.1} parent=0
    _
  %s6 = ssub.s32 1, %s4
  %s7 = scalar_select 0, %s6, %s4
  $region1: #{tpu_custom_call.1} parent=0
    #allocation2 [shape = 'u8[32768]{0}', space=vmem, size = 0x8000, scoped, tag = 'input window, operand 0']
    #allocation3 [shape = 's32[2]{0}', space=sflag, size = 0x8, scoped, tag = 'scoped memory for tpu_custom_call.1']
    #allocation4 [shape = 's32[2]{0}', space=sflag, size = 0x8, scoped, tag = 'scoped memory for tpu_custom_call.1']
    #allocation5 [shape = 'u8[32768]{0}', space=vmem, size = 0x8000, scoped, tag = 'input window, operand 1, single buffered']
    #allocation6 [shape = 's32[1]{0}', space=sflag, size = 0x4, scoped, tag = 'scoped memory for tpu_custom_call.1']
    #allocation7 [shape = 'u8[65536]{0}', space=vmem, size = 0x10000, scoped, tag = 'output window, operand 0']
    %8 = vsyncpa [#allocation3], 0
    %s9 = scalar_lea.sflag [#allocation3], 1
    %10 = vsyncpa %s9, 0
    %11 = vsyncpa [#allocation6], 0
    %12 = vsyncpa [#allocation4], 0
    %s13 = scalar_lea.sflag [#allocation4], 1
    %14 = vsyncpa %s13, 0
    loop: start=0, step=1, limit=4
    $region2: #{tpu_custom_call.1} parent=1 // loop_pre_header
      _
    $region3: #{tpu_custom_call.1} parent=1 // loop_header
      %s16 = sphi 0, %s20
      %p17 = scmp.ge.s32.totalorder %s16, 4
      %s26 = sphi 0, %s28
      %s29 = sphi 0, %s26
      %s30 = sphi 0, %s29
      %s46 = sphi 0, %s30
      %s50 = sphi 0, %s50
      %s52 = sphi 0, %s50
      %s53 = sphi 0, %s52
      %s67 = sphi 0, %s53
      %s71 = sphi 0, %s71
      %s73 = sphi 0, %s71
      %s74 = sphi 0, %s73
      %s88 = sphi 0, %s74
      %s94 = sphi 0, %s96
      %s97 = sphi 0, %s94
      %s98 = sphi 0, %s97
      %s114 = sphi 0, %s98
    $region4: #{tpu_custom_call.1} parent=1 // loop_header_branch
      %19 = sbr.rel (%p17) target = $region8
    $region5: #{tpu_custom_call.1} parent=1 // loop_body
      %s21 = ssub.s32 %s16, 1
      %s22 = ssub.s32 %s16, 2
      %s23 = sadd.s32 %s16, 1
      %s24 = ssub.s32 %s16, %s23
      %p25 = scmp.eq.s32.totalorder %s24, 0
      %s27 = sadd.s32 %s26, 1
      %s28 = scalar_select %p25, %s26, %s27
      %p31 = pneg %p25
      %p32 = scmp.eq.s32.totalorder %s16, 1
      %p33 = por %p31, %p32
      %p34 = scmp.ne.s32.totalorder %s26, %s29
      %p35 = scmp.eq.s32.totalorder %s16, 0
      %p36 = por %p34, %p35
      %p37 = scmp.ne.s32.totalorder %s26, %s29
      %p38 = scmp.eq.s32.totalorder %s21, 1
      %p39 = por %p37, %p38
      %p40 = scmp.ne.s32.totalorder %s29, %s30
      %p41 = scmp.eq.s32.totalorder %s21, 0
      %p42 = por %p40, %p41
      %p43 = scmp.ne.s32.totalorder %s29, %s30
      %p44 = scmp.eq.s32.totalorder %s22, 1
      %p45 = por %p43, %p44
      %p47 = scmp.ne.s32.totalorder %s30, %s46
      %p48 = scmp.eq.s32.totalorder %s22, 0
      %p49 = por %p47, %p48
      %s51 = sadd.s32 %s50, 1
      %p54 = scmp.eq.s32.totalorder %s16, 1
      %p55 = scmp.ne.s32.totalorder %s50, %s52
      %p56 = scmp.eq.s32.totalorder %s16, 0
      %p57 = por %p55, %p56
      %p58 = scmp.ne.s32.totalorder %s50, %s52
      %p59 = scmp.eq.s32.totalorder %s21, 1
      %p60 = por %p58, %p59
      %p61 = scmp.ne.s32.totalorder %s52, %s53
      %p62 = scmp.eq.s32.totalorder %s21, 0
      %p63 = por %p61, %p62
      %p64 = scmp.ne.s32.totalorder %s52, %s53
      %p65 = scmp.eq.s32.totalorder %s22, 1
      %p66 = por %p64, %p65
      %p68 = scmp.ne.s32.totalorder %s53, %s67
      %p69 = scmp.eq.s32.totalorder %s22, 0
      %p70 = por %p68, %p69
      %s72 = sadd.s32 %s71, 1
      %p75 = scmp.eq.s32.totalorder %s16, 1
      %p76 = scmp.ne.s32.totalorder %s71, %s73
      %p77 = scmp.eq.s32.totalorder %s16, 0
      %p78 = por %p76, %p77
      %p79 = scmp.ne.s32.totalorder %s71, %s73
      %p80 = scmp.eq.s32.totalorder %s21, 1
      %p81 = por %p79, %p80
      %p82 = scmp.ne.s32.totalorder %s73, %s74
      %p83 = scmp.eq.s32.totalorder %s21, 0
      %p84 = por %p82, %p83
      %p85 = scmp.ne.s32.totalorder %s73, %s74
      %p86 = scmp.eq.s32.totalorder %s22, 1
      %p87 = por %p85, %p86
      %p89 = scmp.ne.s32.totalorder %s74, %s88
      %p90 = scmp.eq.s32.totalorder %s22, 0
      %p91 = por %p89, %p90
      %s92 = ssub.s32 %s16, %s23
      %p93 = scmp.eq.s32.totalorder %s92, 0
      %s95 = sadd.s32 %s94, 1
      %s96 = scalar_select %p93, %s94, %s95
      %p99 = pneg %p93
      %p100 = scmp.eq.s32.totalorder %s16, 1
      %p101 = por %p99, %p100
      %p102 = scmp.ne.s32.totalorder %s94, %s97
      %p103 = scmp.eq.s32.totalorder %s16, 0
      %p104 = por %p102, %p103
      %p105 = scmp.ne.s32.totalorder %s94, %s97
      %p106 = scmp.eq.s32.totalorder %s21, 1
      %p107 = por %p105, %p106
      %p108 = scmp.ne.s32.totalorder %s97, %s98
      %p109 = scmp.eq.s32.totalorder %s21, 0
      %p110 = por %p108, %p109
      %p111 = scmp.ne.s32.totalorder %s97, %s98
      %p112 = scmp.eq.s32.totalorder %s22, 1
      %p113 = por %p111, %p112
      %p115 = scmp.ne.s32.totalorder %s98, %s114
      %p116 = scmp.eq.s32.totalorder %s22, 0
      %p117 = por %p115, %p116
      %p118 = scmp.le.s32.totalorder 1, %s16
      %p119 = scmp.lt.s32.totalorder %s16, 3
      %p120 = pnand %p118, %p119
      %p121 = pneg %p120
      // Predicated region
      $region9: #{tpu_custom_call.1} parent=5 // pred_check
        _
      $region10: #{tpu_custom_call.1} parent=5 // pred_check_branch
        %123 = sbr.rel (%p120) target = $region12
      $region11: #{tpu_custom_call.1} parent=5 // pred_region
        %s124 = ssub.s32 %s16, 1
        // Predicated region
        $region13: #{tpu_custom_call.1} parent=11 // pred_check
          %p125 = pneg %p63
        $region14: #{tpu_custom_call.1} parent=11 // pred_check_branch
          %127 = sbr.rel (%p125) target = $region16
        $region15: #{tpu_custom_call.1} parent=11 // pred_region
          %s129 = ssub.s32 1024, 1024
          %130 = vsyncadd [#allocation6], %s129
          %s131 = sshll.u32 [#allocation5], 4
          %s132 = int_to_ptr.vmem [resolvable:$true] %s131
          %137 = dma.hbm_to_vmem [thread:$0]  %s1, 1024, %s132, [#allocation6], 64, 64, 4
        $region16: #{tpu_custom_call.1} parent=11 // pred_fallthru
          _
        // Predicated region
        $region17: #{tpu_custom_call.1} parent=11 // pred_check
          %p138 = pneg %p84
        $region18: #{tpu_custom_call.1} parent=11 // pred_check_branch
          %140 = sbr.rel (%p138) target = $region20
        $region19: #{tpu_custom_call.1} parent=11 // pred_region
          _
        $region20: #{tpu_custom_call.1} parent=11 // pred_fallthru
          _
      $region12: #{tpu_custom_call.1} parent=5 // pred_fallthru
        _
      %p141 = scmp.lt.s32.totalorder %s16, 2
      // Predicated region
      $region21: #{tpu_custom_call.1} parent=5 // pred_check
        %p142 = pneg %p141
      $region22: #{tpu_custom_call.1} parent=5 // pred_check_branch
        %144 = sbr.rel (%p142) target = $region24
      $region23: #{tpu_custom_call.1} parent=5 // pred_region
        // Predicated region
        $region25: #{tpu_custom_call.1} parent=23 // pred_check
          %p145 = pneg %p36
        $region26: #{tpu_custom_call.1} parent=23 // pred_check_branch
          %147 = sbr.rel (%p145) target = $region28
        $region27: #{tpu_custom_call.1} parent=23 // pred_region
          %s148 = sand.u32 %s26, 1
          %s149 = scalar_lea.sflag [#allocation3], %s148
          %s150 = sand.u32 %s26, 1
          %s151 = smul.addr %s150, 32
          %s152 = scalar_lea.vmem [#allocation2], %s151
          %s153 = smul.u32 8, %s16
          %s155 = ssub.s32 512, 512
          %156 = vsyncadd %s149, %s155
          %s157 = smul.addr %s153, 64
          %s158 = scalar_lea.hbm %s0, %s157
          %s159 = sshll.u32 %s152, 4
          %s160 = int_to_ptr.vmem [resolvable:$true] %s159
          %165 = dma.hbm_to_vmem [thread:$0]  %s158, 512, %s160, %s149, 64, 64, 4
        $region28: #{tpu_custom_call.1} parent=23 // pred_fallthru
          _
      $region24: #{tpu_custom_call.1} parent=5 // pred_fallthru
        _
      %p166 = scmp.le.s32.totalorder 1, %s16
      %p167 = scmp.lt.s32.totalorder %s16, 3
      %p168 = pnand %p166, %p167
      %p169 = pneg %p168
      // Predicated region
      $region29: #{tpu_custom_call.1} parent=5 // pred_check
        _
      $region30: #{tpu_custom_call.1} parent=5 // pred_check_branch
        %171 = sbr.rel (%p168) target = $region32
      $region31: #{tpu_custom_call.1} parent=5 // pred_region
        %s172 = ssub.s32 %s16, 1
        %s173 = sand.u32 %s29, 1
        %s174 = scalar_lea.sflag [#allocation3], %s173
        %s175 = sand.u32 %s29, 1
        %s176 = smul.addr %s175, 32
        %s177 = scalar_lea.vmem [#allocation2], %s176
        // Predicated region
        $region33: #{tpu_custom_call.1} parent=31 // pred_check
          %p178 = pneg %p42
        $region34: #{tpu_custom_call.1} parent=31 // pred_check_branch
          %180 = sbr.rel (%p178) target = $region36
        $region35: #{tpu_custom_call.1} parent=31 // pred_region
          %181 = dma.done %s174, 512
        $region36: #{tpu_custom_call.1} parent=31 // pred_fallthru
          _
        // Predicated region
        $region37: #{tpu_custom_call.1} parent=31 // pred_check
          %p182 = pneg %p63
        $region38: #{tpu_custom_call.1} parent=31 // pred_check_branch
          %184 = sbr.rel (%p182) target = $region40
        $region39: #{tpu_custom_call.1} parent=31 // pred_region
          %185 = dma.done [#allocation6], 1024
        $region40: #{tpu_custom_call.1} parent=31 // pred_fallthru
          _
        %s186 = sand.u32 %s29, 1
        %s187 = scalar_lea.sflag [#allocation3], %s186
        %s188 = sand.u32 %s29, 1
        %s189 = smul.addr %s188, 32
        %s190 = scalar_lea.vmem [#allocation2], %s189
        %p191 = pneg %p42
        %p192 = pneg %p39
        %p193 = pneg %p63
        %p194 = pneg %p60
        %p195 = pneg %p84
        %p196 = pneg %p81
        %p197 = pneg %p110
        %p198 = pneg %p107
        %s199 = sand.u32 %s97, 1
        %s200 = scalar_lea.sflag [#allocation4], %s199
        %s201 = sand.u32 %s97, 1
        %s202 = smul.addr %s201, 64
        %s203 = scalar_lea.vmem [#allocation7], %s202
        %s204 = smul.u32 8, %s21
        %s205 = smul.u32 8, %s21
        %v207 = vld [vmem:[%s177] sm:$0xf]
        %v208 = vld [vmem:[%s177 + $0x4] sm:$0xf]
        %v209 = vld [vmem:[%s177 + $0x8] sm:$0xf]
        %v210 = vld [vmem:[%s177 + $0xc] sm:$0xf]
        %v211 = vld [vmem:[%s177 + $0x10] sm:$0xf]
        %v212 = vld [vmem:[%s177 + $0x14] sm:$0xf]
        %v213 = vld [vmem:[%s177 + $0x18] sm:$0xf]
        %v214 = vld [vmem:[%s177 + $0x1c] sm:$0xf]
        %v215 = vld [vmem:[#allocation5] sm:$0xf]
        %v216 = vld [vmem:[#allocation5 + $0x4] sm:$0xf]
        %v217 = vld [vmem:[#allocation5 + $0x8] sm:$0xf]
        %v218 = vld [vmem:[#allocation5 + $0xc] sm:$0xf]
        %v219 = vld [vmem:[#allocation5 + $0x10] sm:$0xf]
        %v220 = vld [vmem:[#allocation5 + $0x14] sm:$0xf]
        %v221 = vld [vmem:[#allocation5 + $0x18] sm:$0xf]
        %v222 = vld [vmem:[#allocation5 + $0x1c] sm:$0xf]
        %v223 = vld [vmem:[#allocation5 + $0x20] sm:$0xf]
        %v224 = vld [vmem:[#allocation5 + $0x24] sm:$0xf]
        %v225 = vld [vmem:[#allocation5 + $0x28] sm:$0xf]
        %v226 = vld [vmem:[#allocation5 + $0x2c] sm:$0xf]
        %v227 = vld [vmem:[#allocation5 + $0x30] sm:$0xf]
        %v228 = vld [vmem:[#allocation5 + $0x34] sm:$0xf]
        %v229 = vld [vmem:[#allocation5 + $0x38] sm:$0xf]
        %v230 = vld [vmem:[#allocation5 + $0x3c] sm:$0xf]
        %v231 = vld [vmem:[%s2] sm:$0x1]
        %v233 = vlaneseq
        %v234 = vshrl.u32 %v233, 7
        %v235 = vsub.s32 0, %v234
        %v236 = vrot.slane %v231, %v235
        %v246 = vunpack.c.l.b16 %v207
        %v247 = vunpack.c.l.b16 %v208
        %v248 = vunpack.c.l.b16 %v209
        %v249 = vunpack.c.l.b16 %v210
        %v250 = vunpack.c.l.b16 %v211
        %v251 = vunpack.c.l.b16 %v212
        %v252 = vunpack.c.l.b16 %v213
        %v253 = vunpack.c.l.b16 %v214
        %v254 = vpack.c.b16 %v247, %v246
        %v255 = vpack.c.b16 %v249, %v248
        %v256 = vpack.c.b16 %v251, %v250
        %v257 = vpack.c.b16 %v253, %v252
        %v278 = vunpack.c.l.b16 %v215
        %v279 = vunpack.c.l.b16 %v216
        %v280 = vunpack.c.l.b16 %v217
        %v281 = vunpack.c.l.b16 %v218
        %v282 = vunpack.c.l.b16 %v219
        %v283 = vunpack.c.l.b16 %v220
        %v284 = vunpack.c.l.b16 %v221
        %v285 = vunpack.c.l.b16 %v222
        %v286 = vunpack.c.l.b16 %v223
        %v287 = vunpack.c.l.b16 %v224
        %v288 = vunpack.c.l.b16 %v225
        %v289 = vunpack.c.l.b16 %v226
        %v290 = vunpack.c.l.b16 %v227
        %v291 = vunpack.c.l.b16 %v228
        %v292 = vunpack.c.l.b16 %v229
        %v293 = vunpack.c.l.b16 %v230
        %v294 = vpack.c.b16 %v279, %v278
        %v295 = vpack.c.b16 %v281, %v280
        %v296 = vpack.c.b16 %v283, %v282
        %v297 = vpack.c.b16 %v285, %v284
        %v298 = vpack.c.b16 %v287, %v286
        %v299 = vpack.c.b16 %v289, %v288
        %v300 = vpack.c.b16 %v291, %v290
        %v301 = vpack.c.b16 %v293, %v292
        %310 = vmatprep.subr.bf16.mxu0 0
        %311 = vmatpush1.bf16.msra.mxu0 %v294
        %312 = vmatprep.subr.bf16.mxu0 0
        %313 = vmatpush1.bf16.msra.mxu0 %v295
        %314 = vmatprep.subr.bf16.mxu0 0
        %315 = vmatpush1.bf16.msra.mxu0 %v296
        %316 = vmatprep.subr.bf16.mxu0 0
        %317 = vmatpush1.bf16.msra.mxu0 %v297
        %318 = vmatprep.subr.bf16.mxu0 0
        %319 = vmatpush1.bf16.msra.mxu0 %v298
        %320 = vmatprep.subr.bf16.mxu0 0
        %321 = vmatpush1.bf16.msra.mxu0 %v299
        %322 = vmatprep.subr.bf16.mxu0 0
        %323 = vmatpush1.bf16.msra.mxu0 %v300
        %324 = vmatprep.subr.bf16.mxu0 0
        %325 = vmatpush1.bf16.msra.mxu0 %v301
        %326 = vmatprep.subr.bf16.mxu0 0
        %327 = vmatpush1.bf16.msra.mxu0 0
        %328 = vmatprep.subr.bf16.mxu0 0
        %329 = vmatpush1.bf16.msra.mxu0 0
        %330 = vmatprep.subr.bf16.mxu0 0
        %331 = vmatpush1.bf16.msra.mxu0 0
        %332 = vmatprep.subr.bf16.mxu0 0
        %333 = vmatpush1.bf16.msra.mxu0 0
        %334 = vmatprep.subr.bf16.mxu0 0
        %335 = vmatpush1.bf16.msra.mxu0 0
        %336 = vmatprep.subr.bf16.mxu0 0
        %337 = vmatpush1.bf16.msra.mxu0 0
        %338 = vmatprep.subr.bf16.mxu0 0
        %339 = vmatpush1.bf16.msra.mxu0 0
        %340 = vmatprep.subr.bf16.mxu0 0
        %341 = vmatpush1.bf16.msra.mxu0 0
        %342 = vmatprep.mubr.bf16.mxu0 0
        %343 = vmatmul.mubr.bf16.gmra.mrb[0].mxu0 %v254
        %v344 = vpop.f32.mrb[0].mxu0
        %v345 = vadd.f32 %v236, %v344
        %v346 = vpop.f32.mrb[0].mxu0
        %v347 = vpop.f32.mrb[0].mxu0
        %v348 = vadd.f32 %v236, %v347
        %v349 = vpop.f32.mrb[0].mxu0
        %350 = vmatprep.mubr.bf16.mxu0 0
        %351 = vmatmul.mubr.bf16.gmra.mrb[0].mxu0 %v255
        %v352 = vpop.f32.mrb[0].mxu0
        %v353 = vadd.f32 %v236, %v352
        %v354 = vpop.f32.mrb[0].mxu0
        %v355 = vpop.f32.mrb[0].mxu0
        %v356 = vadd.f32 %v236, %v355
        %v357 = vpop.f32.mrb[0].mxu0
        %358 = vmatprep.mubr.bf16.mxu0 0
        %359 = vmatmul.mubr.bf16.gmra.mrb[0].mxu0 %v256
        %v360 = vpop.f32.mrb[0].mxu0
        %v361 = vadd.f32 %v236, %v360
        %v362 = vpop.f32.mrb[0].mxu0
        %v363 = vpop.f32.mrb[0].mxu0
        %v364 = vadd.f32 %v236, %v363
        %v365 = vpop.f32.mrb[0].mxu0
        %366 = vmatprep.mubr.bf16.mxu0 0
        %367 = vmatmul.mubr.bf16.gmra.mrb[0].mxu0 %v257
        %v368 = vpop.f32.mrb[0].mxu0
        %v369 = vadd.f32 %v236, %v368
        %v370 = vpop.f32.mrb[0].mxu0
        %v371 = vpop.f32.mrb[0].mxu0
        %v372 = vadd.f32 %v236, %v371
        %v373 = vpop.f32.mrb[0].mxu0
        %374 = vdwg.mxu0
        %vm375 = vcmp.gt.f32.partialorder %v345, 0.0
        %vm376 = vcmp.gt.f32.partialorder %v348, 0.0
        %vm377 = vcmp.gt.f32.partialorder %v353, 0.0
        %vm378 = vcmp.gt.f32.partialorder %v356, 0.0
        %vm379 = vcmp.gt.f32.partialorder %v361, 0.0
        %vm380 = vcmp.gt.f32.partialorder %v364, 0.0
        %vm381 = vcmp.gt.f32.partialorder %v369, 0.0
        %vm382 = vcmp.gt.f32.partialorder %v372, 0.0
        %v383 = vmul.f32 %v345, 0.2
        %v384 = vmul.f32 %v348, 0.2
        %v385 = vmul.f32 %v353, 0.2
        %v386 = vmul.f32 %v356, 0.2
        %v387 = vmul.f32 %v361, 0.2
        %v388 = vmul.f32 %v364, 0.2
        %v389 = vmul.f32 %v369, 0.2
        %v390 = vmul.f32 %v372, 0.2
        %v391 = vsel %vm375, %v345, %v383
        %v392 = vsel %vm376, %v348, %v384
        %v393 = vsel %vm377, %v353, %v385
        %v394 = vsel %vm378, %v356, %v386
        %v395 = vsel %vm379, %v361, %v387
        %v396 = vsel %vm380, %v364, %v388
        %v397 = vsel %vm381, %v369, %v389
        %v398 = vsel %vm382, %v372, %v390
        %399 = vst [vmem:[%s203] sm:$0xff] %v391
        %400 = vst [vmem:[%s203 + $0x8] sm:$0xff] %v392
        %401 = vst [vmem:[%s203 + $0x10] sm:$0xff] %v393
        %402 = vst [vmem:[%s203 + $0x18] sm:$0xff] %v394
        %403 = vst [vmem:[%s203 + $0x20] sm:$0xff] %v395
        %404 = vst [vmem:[%s203 + $0x28] sm:$0xff] %v396
        %405 = vst [vmem:[%s203 + $0x30] sm:$0xff] %v397
        %406 = vst [vmem:[%s203 + $0x38] sm:$0xff] %v398
        %s407 = sand.u32 %s97, 1
        %s408 = scalar_lea.sflag [#allocation4], %s407
        %s409 = sand.u32 %s97, 1
        %s410 = smul.addr %s409, 64
        %s411 = scalar_lea.vmem [#allocation7], %s410
        // Predicated region
        $region41: #{tpu_custom_call.1} parent=31 // pred_check
          %p412 = pneg %p107
        $region42: #{tpu_custom_call.1} parent=31 // pred_check_branch
          %414 = sbr.rel (%p412) target = $region44
        $region43: #{tpu_custom_call.1} parent=31 // pred_region
          %s415 = smul.u32 8, %s21
          %s417 = ssub.s32 1024, 1024
          %418 = vsyncadd %s408, %s417
          %s419 = smul.addr %s415, 128
          %s420 = scalar_lea.hbm %s3, %s419
          %s421 = sshll.u32 %s411, 4
          %s422 = int_to_ptr.vmem [resolvable:$true] %s421
          %427 = dma.vmem_to_hbm [thread:$0]  %s422, 1024, %s420, %s408, 128, 128, 8
        $region44: #{tpu_custom_call.1} parent=31 // pred_fallthru
          _
      $region32: #{tpu_custom_call.1} parent=5 // pred_fallthru
        _
      %p428 = scmp.le.s32.totalorder 2, %s16
      // Predicated region
      $region45: #{tpu_custom_call.1} parent=5 // pred_check
        %p429 = pneg %p428
      $region46: #{tpu_custom_call.1} parent=5 // pred_check_branch
        %431 = sbr.rel (%p429) target = $region48
      $region47: #{tpu_custom_call.1} parent=5 // pred_region
        %s432 = ssub.s32 %s16, 2
        // Predicated region
        $region49: #{tpu_custom_call.1} parent=47 // pred_check
          %p433 = pneg %p113
        $region50: #{tpu_custom_call.1} parent=47 // pred_check_branch
          %435 = sbr.rel (%p433) target = $region52
        $region51: #{tpu_custom_call.1} parent=47 // pred_region
          %s436 = sand.u32 %s98, 1
          %s437 = scalar_lea.sflag [#allocation4], %s436
          %s438 = sand.u32 %s98, 1
          %s439 = smul.addr %s438, 64
          %s440 = scalar_lea.vmem [#allocation7], %s439
          %441 = dma.done %s437, 1024
        $region52: #{tpu_custom_call.1} parent=47 // pred_fallthru
          _
      $region48: #{tpu_custom_call.1} parent=5 // pred_fallthru
        _
    $region6: #{tpu_custom_call.1} parent=1 // loop_footer
      %s20 = sadd.s32 1, %s16
    $region7: #{tpu_custom_call.1} parent=1 // loop_footer_branch
      %15 = sbr.rel target = $region3
    $region8: #{tpu_custom_call.1} parent=1 // loop_exit
      _
    %442 = vsyncpa [#allocation3], 1
    %s443 = scalar_lea.sflag [#allocation3], 1
    %444 = vsyncpa %s443, 1
    %445 = vsyncpa [#allocation6], 1
    %446 = vsyncpa [#allocation4], 1
    %s447 = scalar_lea.sflag [#allocation4], 1
    %448 = vsyncpa %s447, 1

</llo_original>
